<compile_context>
chip_gen: v6e
topology: v6e:2x2x1
jax: 0.10.0
libtpu: 0.0.40
codegen_flags: <defaults>
</compile_context>

<pallas_src>
import jax
import jax.numpy as jnp
from jax.experimental import pallas as pl
from jax.experimental.pallas import tpu as pltpu


_LANE = 128                 # output block lane width granularity
_TARGET_TB = 256 * 1024     # ~2 MiB f32 input block per grid step for huge B
_PALLAS_MIN_BATCH = 4096    # below this, plain XLA is strictly faster


def linear_kernel(w_ref, b_ref, xt_ref, ot_ref):
    # w_ref: (OUT=1, IN) SMEM scalars, b_ref: (OUT=1,) SMEM scalar,
    # xt_ref: (IN, TB) VMEM (feature-major), ot_ref: (OUT=1, TB) VMEM.
    in_features = xt_ref.shape[0]  # static (== 2)

    # Fused VPU expression: y = x0*w0 + x1*w1 + b (unrolled at trace time).
    y = xt_ref[0:1, :] * w_ref[0, 0]
    for k in range(1, in_features):
        y = y + xt_ref[k:k + 1, :] * w_ref[0, k]
    y = y + b_ref[0]

    ot_ref[...] = y.astype(ot_ref.dtype)


def _choose_tb(B):
    """Lane-aligned column-block size for the transposed (IN, B) view."""
    if B <= 2 * _TARGET_TB:
        # Up to two blocks (>=2 grid steps lets v7x use both TensorCores when
        # B is large enough), never below one full vreg lane width.
        half = pl.cdiv(B, 2)
        return max(_LANE, pl.cdiv(half, _LANE) * _LANE)
    return _TARGET_TB


def linear_forward(x, w, b, *, force_pallas=False):
    """x (B, IN) f32, w (OUT, IN) f32, b (OUT,) f32 -> logits (B, OUT) f32."""
    B, IN = x.shape
    OUT = w.shape[0]

    # Small-batch fast path: pallas_call launch + single-step overhead
    # dominates; XLA's fused elementwise op is strictly faster here.
    if not force_pallas and B < _PALLAS_MIN_BATCH:
        return x @ w.T + b[None, :]

    TB = _choose_tb(B)
    Bp = pl.cdiv(B, TB) * TB          # padded batch (multiple of TB)

    # One wrapper-side transpose to the lane-dense feature-major layout.
    xt = x.T                          # (IN, B)
    if Bp != B:
        xt = jnp.pad(xt, ((0, 0), (0, Bp - B)))

    out_t = pl.pallas_call(
        linear_kernel,
        out_shape=jax.ShapeDtypeStruct((OUT, Bp), jnp.float32),
        grid=(Bp // TB,),
        in_specs=[
            # Tiny parameters live in SMEM (scalar reads), untiled.
            pl.BlockSpec(memory_space=pltpu.MemorySpace.SMEM),   # w (OUT, IN)
            pl.BlockSpec(memory_space=pltpu.MemorySpace.SMEM),   # b (OUT,)
            # Activations tiled along the lane (batch) axis, full-lane DMAs.
            pl.BlockSpec((IN, TB), lambda i: (0, i)),            # x.T
        ],
        out_specs=pl.BlockSpec((OUT, TB), lambda i: (0, i)),
        compiler_params=pltpu.CompilerParams(
            # Batch blocks are independent -> parallel (2-TC sharding on v7x).
            dimension_semantics=("parallel",),
        ),
    )(w, b, xt)

    # (OUT, Bp) -> (B, OUT); for OUT == 1 this is a free reshape of the same
    # row-major bytes after dropping the padded columns.
    return out_t[:, :B].T


def predict(x_row, w, b):
    """Mirror of Model.predict: sigmoid(logit) >= 0.5  <=>  logit >= 0."""
    logit = linear_forward(x_row, w, b)
    return (logit >= 0.0).astype(jnp.int32)


if __name__ == "__main__":
    key = jax.random.PRNGKey(0)
    k_x, k_w, k_b, k_x2 = jax.random.split(key, 4)

    IN, OUT = 2, 1

    # Deterministic parameter init (mimics nn.Linear uniform(-1/sqrt(IN), 1/sqrt(IN))).
    bound = 1.0 / jnp.sqrt(jnp.float32(IN))
    W = jax.random.uniform(k_w, (OUT, IN), jnp.float32, -bound, bound)
    bias = jax.random.uniform(k_b, (OUT,), jnp.float32, -bound, bound)

    # 1) Tiny batch consistent with the module -> fast path (no Pallas).
    B_small = 8
    X_small = jax.random.normal(k_x, (B_small, IN), jnp.float32)
    y_small = jax.block_until_ready(linear_forward(X_small, W, bias))
    ref_small = X_small @ W.T + bias[None, :]
    assert y_small.shape == (B_small, OUT)
    assert jnp.allclose(y_small, ref_small, atol=1e-5), "small-batch mismatch"

    # 2) Pallas kernel path (forced) at a modest batch so the lane-dense
    #    kernel itself runs: TB=1024 -> grid of 2 parallel steps.
    B = 2048
    X = jax.random.normal(k_x2, (B, IN), jnp.float32)
    y = jax.block_until_ready(linear_forward(X, W, bias, force_pallas=True))
    y_ref = X @ W.T + bias[None, :]
    assert y.shape == (B, OUT)
    assert jnp.allclose(y, y_ref, atol=1e-5), "pallas mismatch vs reference"

    # 3) predict() path on one row.
    cls = jax.block_until_ready(predict(X[:1], W, bias))
    cls_ref = (jax.nn.sigmoid(y_ref[:1]) >= 0.5).astype(jnp.int32)
    assert jnp.array_equal(cls, cls_ref), "predict mismatch vs reference"

    print("KERNEL_OK")
</pallas_src>

<mosaic_0001>
module attributes {stable_mosaic.version = 11 : i64} {
  func.func @linear_kernel(%arg0: i32, %arg1: memref<1x2xf32, #tpu.memory_space<smem>>, %arg2: memref<1xf32, #tpu.memory_space<smem>>, %arg3: memref<2x1024xf32, #tpu.memory_space<vmem>>, %arg4: memref<1x1024xf32, #tpu.memory_space<vmem>>) attributes {dimension_semantics = [#tpu.dimension_semantics<parallel>], iteration_bounds = array<i64: 2>, scalar_prefetch = 0 : i64, scratch_operands = 0 : i64, tpu.core_type = #tpu.core_type<tc>, window_params = [{transform_indices = @transform_0, window_bounds = array<i64: 1, 2>}, {transform_indices = @transform_1, window_bounds = array<i64: 1>}, {transform_indices = @transform_2, window_bounds = array<i64: 2, 1024>}, {transform_indices = @transform_3, window_bounds = array<i64: 1, 1024>}]} {
    %c0 = arith.constant 0 : index
    %c0_0 = arith.constant 0 : index
    %0 = vector.load %arg3[%c0, %c0_0] : memref<2x1024xf32, #tpu.memory_space<vmem>>, vector<1x1024xf32>
    %c0_1 = arith.constant 0 : index
    %c0_2 = arith.constant 0 : index
    %1 = memref.load %arg1[%c0_1, %c0_2] : memref<1x2xf32, #tpu.memory_space<smem>>
    %2 = vector.broadcast %1 : f32 to vector<1x1024xf32>
    %3 = arith.mulf %0, %2 : vector<1x1024xf32>
    %c1 = arith.constant 1 : index
    %c0_3 = arith.constant 0 : index
    %4 = vector.load %arg3[%c1, %c0_3] : memref<2x1024xf32, #tpu.memory_space<vmem>>, vector<1x1024xf32>
    %c0_4 = arith.constant 0 : index
    %c1_5 = arith.constant 1 : index
    %5 = memref.load %arg1[%c0_4, %c1_5] : memref<1x2xf32, #tpu.memory_space<smem>>
    %6 = vector.broadcast %5 : f32 to vector<1x1024xf32>
    %7 = arith.mulf %4, %6 : vector<1x1024xf32>
    %8 = arith.addf %3, %7 : vector<1x1024xf32>
    %c0_6 = arith.constant 0 : index
    %9 = memref.load %arg2[%c0_6] : memref<1xf32, #tpu.memory_space<smem>>
    %10 = vector.broadcast %9 : f32 to vector<1x1024xf32>
    %11 = arith.addf %8, %10 : vector<1x1024xf32>
    %c0_7 = arith.constant 0 : index
    %c0_8 = arith.constant 0 : index
    %12 = vector.load %arg4[%c0_7, %c0_8] : memref<1x1024xf32, #tpu.memory_space<vmem>>, vector<1x1024xf32>
    tpu.vector_store %arg4[%c0_7, %c0_8], %11 {strides = array<i32>} : memref<1x1024xf32, #tpu.memory_space<vmem>>, vector<1x1024xf32>,
    return
  }
  func.func @transform_0(%arg0: i32) -> (i32, i32) {
    %c0_i32 = arith.constant 0 : i32
    %c0_i32_0 = arith.constant 0 : i32
    %c0_i32_1 = arith.constant 0 : i32
    return %c0_i32, %c0_i32_0 : i32, i32
  }
  func.func @transform_1(%arg0: i32) -> i32 {
    %c0_i32 = arith.constant 0 : i32
    %c0_i32_0 = arith.constant 0 : i32
    return %c0_i32 : i32
  }
  func.func @transform_2(%arg0: i32) -> (i32, i32) {
    %c0_i32 = arith.constant 0 : i32
    %c0_i32_0 = arith.constant 0 : i32
    return %c0_i32, %arg0 : i32, i32
  }
  func.func @transform_3(%arg0: i32) -> (i32, i32) {
    %c0_i32 = arith.constant 0 : i32
    %c0_i32_0 = arith.constant 0 : i32
    return %c0_i32, %arg0 : i32, i32
  }
}

</mosaic_0001>

<llo_original>
// kernel: tpu_custom_call.1
$region0: #{tpu_custom_call.1}
  #allocation0 [shape = 'u32[]', space=smem, size = 0x4, offset = 0x4, fixed_abs, tag = 'smem constant byte address 0x4 - core index']
  #allocation1 [shape = 'u32[144,128]{1,0:T(1,128)}', space=vmem, size = 0x12000, scoped, tag = 'internal scratch']
  #allocation2 [shape = 'f32[1]{0:T(128)S(6)}', space=smem, size = 0x200, scoped, tag = 'scoped memory for tpu_custom_call.1']
  %s0 = inlined_call_operand.vmem [shape: f32[1,2], index: 0, kind: input, shape index: {}]
  %s1 = inlined_call_operand.<no memory space> [shape: f32[1], index: 1, kind: input, shape index: {}]
  %s2 = inlined_call_operand.hbm [shape: f32[2,2048], index: 2, kind: input, shape index: {}]
  %s3 = inlined_call_operand.hbm [shape: f32[1,2048], index: 3, kind: output, shape index: {}]
  %s4 = sld [smem:[#allocation0]]
  $region53: #{tpu_custom_call.1} parent=0
    _
  %s6 = ssub.s32 1, %s4
  %s7 = scalar_select 0, %s6, %s4
  %8 = sst [smem:[#allocation2]] %s1
  $region1: #{tpu_custom_call.1} parent=0
    #allocation3 [shape = 'u8[512]{0}', space=smem, size = 0x200, scoped, tag = 'input window, operand 0, single buffered']
    #allocation4 [shape = 's32[2]{0}', space=sflag, size = 0x8, scoped, tag = 'scoped memory for tpu_custom_call.1']
    #allocation5 [shape = 's32[2]{0}', space=sflag, size = 0x8, scoped, tag = 'scoped memory for tpu_custom_call.1']
    #allocation6 [shape = 's32[2]{0}', space=sflag, size = 0x8, scoped, tag = 'scoped memory for tpu_custom_call.1']
    #allocation7 [shape = 'u8[16384]{0}', space=vmem, size = 0x4000, scoped, tag = 'input window, operand 2']
    #allocation8 [shape = 'u8[8192]{0}', space=vmem, size = 0x2000, scoped, tag = 'output window, operand 0']
    %9 = vsyncpa [#allocation6], 0
    %10 = vsyncpa [#allocation4], 0
    %s11 = scalar_lea.sflag [#allocation4], 1
    %12 = vsyncpa %s11, 0
    %13 = vsyncpa [#allocation5], 0
    %s14 = scalar_lea.sflag [#allocation5], 1
    %15 = vsyncpa %s14, 0
    loop: start=0, step=1, limit=4
    $region2: #{tpu_custom_call.1} parent=1 // loop_pre_header
      _
    $region3: #{tpu_custom_call.1} parent=1 // loop_header
      %s17 = sphi 0, %s21
      %p18 = scmp.ge.s32.totalorder %s17, 4
      %s25 = sphi 0, %s25
      %s27 = sphi 0, %s25
      %s28 = sphi 0, %s27
      %s42 = sphi 0, %s28
      %s46 = sphi 0, %s46
      %s48 = sphi 0, %s46
      %s49 = sphi 0, %s48
      %s63 = sphi 0, %s49
      %s69 = sphi 0, %s71
      %s72 = sphi 0, %s69
      %s73 = sphi 0, %s72
      %s89 = sphi 0, %s73
      %s95 = sphi 0, %s97
      %s98 = sphi 0, %s95
      %s99 = sphi 0, %s98
      %s115 = sphi 0, %s99
    $region4: #{tpu_custom_call.1} parent=1 // loop_header_branch
      %20 = sbr.rel (%p18) target = $region8
    $region5: #{tpu_custom_call.1} parent=1 // loop_body
      %s22 = ssub.s32 %s17, 1
      %s23 = ssub.s32 %s17, 2
      %s24 = sadd.s32 %s17, 1
      %s26 = sadd.s32 %s25, 1
      %p29 = scmp.eq.s32.totalorder %s17, 1
      %p30 = scmp.ne.s32.totalorder %s25, %s27
      %p31 = scmp.eq.s32.totalorder %s17, 0
      %p32 = por %p30, %p31
      %p33 = scmp.ne.s32.totalorder %s25, %s27
      %p34 = scmp.eq.s32.totalorder %s22, 1
      %p35 = por %p33, %p34
      %p36 = scmp.ne.s32.totalorder %s27, %s28
      %p37 = scmp.eq.s32.totalorder %s22, 0
      %p38 = por %p36, %p37
      %p39 = scmp.ne.s32.totalorder %s27, %s28
      %p40 = scmp.eq.s32.totalorder %s23, 1
      %p41 = por %p39, %p40
      %p43 = scmp.ne.s32.totalorder %s28, %s42
      %p44 = scmp.eq.s32.totalorder %s23, 0
      %p45 = por %p43, %p44
      %s47 = sadd.s32 %s46, 1
      %p50 = scmp.eq.s32.totalorder %s17, 1
      %p51 = scmp.ne.s32.totalorder %s46, %s48
      %p52 = scmp.eq.s32.totalorder %s17, 0
      %p53 = por %p51, %p52
      %p54 = scmp.ne.s32.totalorder %s46, %s48
      %p55 = scmp.eq.s32.totalorder %s22, 1
      %p56 = por %p54, %p55
      %p57 = scmp.ne.s32.totalorder %s48, %s49
      %p58 = scmp.eq.s32.totalorder %s22, 0
      %p59 = por %p57, %p58
      %p60 = scmp.ne.s32.totalorder %s48, %s49
      %p61 = scmp.eq.s32.totalorder %s23, 1
      %p62 = por %p60, %p61
      %p64 = scmp.ne.s32.totalorder %s49, %s63
      %p65 = scmp.eq.s32.totalorder %s23, 0
      %p66 = por %p64, %p65
      %s67 = ssub.s32 %s17, %s24
      %p68 = scmp.eq.s32.totalorder %s67, 0
      %s70 = sadd.s32 %s69, 1
      %s71 = scalar_select %p68, %s69, %s70
      %p74 = pneg %p68
      %p75 = scmp.eq.s32.totalorder %s17, 1
      %p76 = por %p74, %p75
      %p77 = scmp.ne.s32.totalorder %s69, %s72
      %p78 = scmp.eq.s32.totalorder %s17, 0
      %p79 = por %p77, %p78
      %p80 = scmp.ne.s32.totalorder %s69, %s72
      %p81 = scmp.eq.s32.totalorder %s22, 1
      %p82 = por %p80, %p81
      %p83 = scmp.ne.s32.totalorder %s72, %s73
      %p84 = scmp.eq.s32.totalorder %s22, 0
      %p85 = por %p83, %p84
      %p86 = scmp.ne.s32.totalorder %s72, %s73
      %p87 = scmp.eq.s32.totalorder %s23, 1
      %p88 = por %p86, %p87
      %p90 = scmp.ne.s32.totalorder %s73, %s89
      %p91 = scmp.eq.s32.totalorder %s23, 0
      %p92 = por %p90, %p91
      %s93 = ssub.s32 %s17, %s24
      %p94 = scmp.eq.s32.totalorder %s93, 0
      %s96 = sadd.s32 %s95, 1
      %s97 = scalar_select %p94, %s95, %s96
      %p100 = pneg %p94
      %p101 = scmp.eq.s32.totalorder %s17, 1
      %p102 = por %p100, %p101
      %p103 = scmp.ne.s32.totalorder %s95, %s98
      %p104 = scmp.eq.s32.totalorder %s17, 0
      %p105 = por %p103, %p104
      %p106 = scmp.ne.s32.totalorder %s95, %s98
      %p107 = scmp.eq.s32.totalorder %s22, 1
      %p108 = por %p106, %p107
      %p109 = scmp.ne.s32.totalorder %s98, %s99
      %p110 = scmp.eq.s32.totalorder %s22, 0
      %p111 = por %p109, %p110
      %p112 = scmp.ne.s32.totalorder %s98, %s99
      %p113 = scmp.eq.s32.totalorder %s23, 1
      %p114 = por %p112, %p113
      %p116 = scmp.ne.s32.totalorder %s99, %s115
      %p117 = scmp.eq.s32.totalorder %s23, 0
      %p118 = por %p116, %p117
      %p119 = scmp.le.s32.totalorder 1, %s17
      %p120 = scmp.lt.s32.totalorder %s17, 3
      %p121 = pnand %p119, %p120
      %p122 = pneg %p121
      // Predicated region
      $region9: #{tpu_custom_call.1} parent=5 // pred_check
        _
      $region10: #{tpu_custom_call.1} parent=5 // pred_check_branch
        %124 = sbr.rel (%p121) target = $region12
      $region11: #{tpu_custom_call.1} parent=5 // pred_region
        %s125 = ssub.s32 %s17, 1
        // Predicated region
        $region13: #{tpu_custom_call.1} parent=11 // pred_check
          %p126 = pneg %p38
        $region14: #{tpu_custom_call.1} parent=11 // pred_check_branch
          %128 = sbr.rel (%p126) target = $region16
        $region15: #{tpu_custom_call.1} parent=11 // pred_region
          %s130 = ssub.s32 16, 16
          %131 = vsyncadd [#allocation6], %s130
          %s133 = sshll.u32 %s0, 4
          %s134 = int_to_ptr.vmem [resolvable:$true] %s133
          %136 = dma.vmem_to_smem %s134, 16, [#allocation3], [#allocation6]
        $region16: #{tpu_custom_call.1} parent=11 // pred_fallthru
          _
        // Predicated region
        $region17: #{tpu_custom_call.1} parent=11 // pred_check
          %p137 = pneg %p59
        $region18: #{tpu_custom_call.1} parent=11 // pred_check_branch
          %139 = sbr.rel (%p137) target = $region20
        $region19: #{tpu_custom_call.1} parent=11 // pred_region
          _
        $region20: #{tpu_custom_call.1} parent=11 // pred_fallthru
          _
      $region12: #{tpu_custom_call.1} parent=5 // pred_fallthru
        _
      %p140 = scmp.lt.s32.totalorder %s17, 2
      // Predicated region
      $region21: #{tpu_custom_call.1} parent=5 // pred_check
        %p141 = pneg %p140
      $region22: #{tpu_custom_call.1} parent=5 // pred_check_branch
        %143 = sbr.rel (%p141) target = $region24
      $region23: #{tpu_custom_call.1} parent=5 // pred_region
        // Predicated region
        $region25: #{tpu_custom_call.1} parent=23 // pred_check
          %p144 = pneg %p79
        $region26: #{tpu_custom_call.1} parent=23 // pred_check_branch
          %146 = sbr.rel (%p144) target = $region28
        $region27: #{tpu_custom_call.1} parent=23 // pred_region
          %s147 = sand.u32 %s69, 1
          %s148 = scalar_lea.sflag [#allocation4], %s147
          %s149 = sand.u32 %s69, 1
          %s150 = smul.addr %s149, 16
          %s151 = scalar_lea.vmem [#allocation7], %s150
          %s152 = smul.u32 8, %s17
          %s154 = ssub.s32 256, 256
          %155 = vsyncadd %s148, %s154
          %s156 = smul.addr %s152, 32
          %s157 = scalar_lea.hbm %s2, %s156
          %s159 = sshll.u32 %s151, 4
          %s160 = int_to_ptr.vmem [resolvable:$true] %s159
          %162 = dma.hbm_to_vmem [thread:$0]  %s157, 256, %s160, %s148
        $region28: #{tpu_custom_call.1} parent=23 // pred_fallthru
          _
      $region24: #{tpu_custom_call.1} parent=5 // pred_fallthru
        _
      %p163 = scmp.le.s32.totalorder 1, %s17
      %p164 = scmp.lt.s32.totalorder %s17, 3
      %p165 = pnand %p163, %p164
      %p166 = pneg %p165
      // Predicated region
      $region29: #{tpu_custom_call.1} parent=5 // pred_check
        _
      $region30: #{tpu_custom_call.1} parent=5 // pred_check_branch
        %168 = sbr.rel (%p165) target = $region32
      $region31: #{tpu_custom_call.1} parent=5 // pred_region
        %s169 = ssub.s32 %s17, 1
        // Predicated region
        $region33: #{tpu_custom_call.1} parent=31 // pred_check
          %p170 = pneg %p38
        $region34: #{tpu_custom_call.1} parent=31 // pred_check_branch
          %172 = sbr.rel (%p170) target = $region36
        $region35: #{tpu_custom_call.1} parent=31 // pred_region
          %173 = dma.done [#allocation6], 16
        $region36: #{tpu_custom_call.1} parent=31 // pred_fallthru
          _
        %s174 = sand.u32 %s72, 1
        %s175 = scalar_lea.sflag [#allocation4], %s174
        %s176 = sand.u32 %s72, 1
        %s177 = smul.addr %s176, 16
        %s178 = scalar_lea.vmem [#allocation7], %s177
        // Predicated region
        $region37: #{tpu_custom_call.1} parent=31 // pred_check
          %p179 = pneg %p85
        $region38: #{tpu_custom_call.1} parent=31 // pred_check_branch
          %181 = sbr.rel (%p179) target = $region40
        $region39: #{tpu_custom_call.1} parent=31 // pred_region
          %182 = dma.done %s175, 256
        $region40: #{tpu_custom_call.1} parent=31 // pred_fallthru
          _
        %183 = sfence
        %p184 = pneg %p38
        %p185 = pneg %p35
        %p186 = pneg %p59
        %p187 = pneg %p56
        %s188 = sand.u32 %s72, 1
        %s189 = scalar_lea.sflag [#allocation4], %s188
        %s190 = sand.u32 %s72, 1
        %s191 = smul.addr %s190, 16
        %s192 = scalar_lea.vmem [#allocation7], %s191
        %p193 = pneg %p85
        %p194 = pneg %p82
        %p195 = pneg %p111
        %p196 = pneg %p108
        %s197 = sand.u32 %s98, 1
        %s198 = scalar_lea.sflag [#allocation5], %s197
        %s199 = sand.u32 %s98, 1
        %s200 = smul.addr %s199, 8
        %s201 = scalar_lea.vmem [#allocation8], %s200
        %s202 = smul.u32 8, %s22
        %s203 = smul.u32 8, %s22
        %v204 = vld [vmem:[%s178] ss:$2 sm:$0xff]
        %s205 = sld [smem:[#allocation3]]
        %v206 = vstv %s205
        %v207 = vmul.f32 %v204, %v206
        %s208 = scalar_lea.vmem %s178, 1 [#allocation7]
        %v209 = vld [vmem:[%s208] ss:$2 sm:$0xff]
        %s210 = sld [smem:[#allocation3 + $0x1]]
        %v211 = vstv %s210
        %v212 = vmul.f32 %v209, %v211
        %v213 = vadd.f32 %v207, %v212
        %s214 = sld [smem:[#allocation2]]
        %v215 = vstv %s214
        %v216 = vadd.f32 %v213, %v215
        %217 = vst [vmem:[%s201] sm:$0xff] %v216
        %s218 = sand.u32 %s98, 1
        %s219 = scalar_lea.sflag [#allocation5], %s218
        %s220 = sand.u32 %s98, 1
        %s221 = smul.addr %s220, 8
        %s222 = scalar_lea.vmem [#allocation8], %s221
        // Predicated region
        $region41: #{tpu_custom_call.1} parent=31 // pred_check
          %p223 = pneg %p108
        $region42: #{tpu_custom_call.1} parent=31 // pred_check_branch
          %225 = sbr.rel (%p223) target = $region44
        $region43: #{tpu_custom_call.1} parent=31 // pred_region
          %s226 = smul.u32 8, %s22
          %s228 = ssub.s32 128, 128
          %229 = vsyncadd %s219, %s228
          %s230 = smul.addr %s226, 16
          %s231 = scalar_lea.hbm %s3, %s230
          %s233 = sshll.u32 %s222, 4
          %s234 = int_to_ptr.vmem [resolvable:$true] %s233
          %236 = dma.vmem_to_hbm [thread:$0]  %s234, 128, %s231, %s219
        $region44: #{tpu_custom_call.1} parent=31 // pred_fallthru
          _
      $region32: #{tpu_custom_call.1} parent=5 // pred_fallthru
        _
      %p237 = scmp.le.s32.totalorder 2, %s17
      // Predicated region
      $region45: #{tpu_custom_call.1} parent=5 // pred_check
        %p238 = pneg %p237
      $region46: #{tpu_custom_call.1} parent=5 // pred_check_branch
        %240 = sbr.rel (%p238) target = $region48
      $region47: #{tpu_custom_call.1} parent=5 // pred_region
        %s241 = ssub.s32 %s17, 2
        // Predicated region
        $region49: #{tpu_custom_call.1} parent=47 // pred_check
          %p242 = pneg %p114
        $region50: #{tpu_custom_call.1} parent=47 // pred_check_branch
          %244 = sbr.rel (%p242) target = $region52
        $region51: #{tpu_custom_call.1} parent=47 // pred_region
          %s245 = sand.u32 %s99, 1
          %s246 = scalar_lea.sflag [#allocation5], %s245
          %s247 = sand.u32 %s99, 1
          %s248 = smul.addr %s247, 8
          %s249 = scalar_lea.vmem [#allocation8], %s248
          %250 = dma.done %s246, 128
        $region52: #{tpu_custom_call.1} parent=47 // pred_fallthru
          _
      $region48: #{tpu_custom_call.1} parent=5 // pred_fallthru
        _
    $region6: #{tpu_custom_call.1} parent=1 // loop_footer
      %s21 = sadd.s32 1, %s17
    $region7: #{tpu_custom_call.1} parent=1 // loop_footer_branch
      %16 = sbr.rel target = $region3
    $region8: #{tpu_custom_call.1} parent=1 // loop_exit
      _
    %251 = vsyncpa [#allocation4], 1
    %s252 = scalar_lea.sflag [#allocation4], 1
    %253 = vsyncpa %s252, 1
    %254 = vsyncpa [#allocation5], 1
    %s255 = scalar_lea.sflag [#allocation5], 1
    %256 = vsyncpa %s255, 1
    %257 = vsyncpa [#allocation6], 1
    %s258 = scalar_lea.sflag [#allocation6], 1
    %259 = vsyncpa %s258, 1

</llo_original>
